<compile_context>
chip_gen: v5e
topology: v5e:2x2
jax: 0.10.0
libtpu: 0.0.40
codegen_flags: <defaults>
</compile_context>

<pallas_src>
import functools

import jax
import jax.numpy as jnp
from jax.experimental import pallas as pl
from jax.experimental.pallas import tpu as pltpu

GAMMA = 1.0
EPS = 1e-07            # kept for API parity with the torch module; unused here
IGNORE_INDEX = -100

_VMEM_WORK_BUDGET = 32 * 1024 * 1024   # target working set (buffers + temporaries)
_VMEM_LIMIT = 48 * 1024 * 1024         # safe on v5e/v6e (128 MiB) and v7x (64 MiB)
_MAX_ROW_TILE = 4096


def _round_up(x, m):
    return ((x + m - 1) // m) * m


def _focal_loss_kernel(tgt_ref, x_ref, out_ref, *, gamma, ignore_index,
                       n_rows, row_tile):
    # Logits arrive in their native dtype (bf16/f32); cast on-chip only.
    x = x_ref[...].astype(jnp.float32)     # (TN, C)
    t = tgt_ref[...]                       # (TN, 1) int32

    # Mask out-of-range rows of the (possibly ragged) last grid step.
    row_idx = (pl.program_id(0) * row_tile
               + jax.lax.broadcasted_iota(jnp.int32, t.shape, 0))
    valid = (row_idx < n_rows) & (t != ignore_index)           # (TN, 1) bool

    # Stable log-softmax; the only O(TN*C) transcendental is this exp.
    m = jnp.max(x, axis=-1, keepdims=True)                     # (TN, 1)
    e = jnp.exp(x - m)                                          # (TN, C)
    log_denom = jnp.log(jnp.sum(e, axis=-1, keepdims=True))     # (TN, 1)

    # x at the target column via select-and-sum (XLU reduce, no full one-hot).
    cls_idx = jax.lax.broadcasted_iota(jnp.int32, x.shape, 1)
    x_t = jnp.sum(jnp.where(cls_idx == t, x - m, 0.0), axis=-1, keepdims=True)

    log_pt = x_t - log_denom                                    # <= 0
    pt = jnp.exp(log_pt)                                        # <= 1

    # (1 - pt)^gamma, specialised at trace time (gamma is a static float).
    if gamma == 0.0:
        mod = jnp.ones_like(pt)
    elif gamma == 1.0:
        mod = 1.0 - pt
    elif gamma == 2.0:
        mod = (1.0 - pt) * (1.0 - pt)
    else:
        mod = jnp.exp(gamma * jnp.log1p(-pt))

    # where (not multiply) so garbage tail rows (possibly NaN/inf) cannot leak.
    loss_row = jnp.where(valid, -mod * log_pt, 0.0)             # (TN, 1), finite

    tile_sum = jnp.sum(loss_row)
    tile_cnt = jnp.sum(valid.astype(jnp.float32))

    # Lane-dense per-tile partial: sum in (sublane 0, lane 0), count in lane 1.
    sub = jax.lax.broadcasted_iota(jnp.int32, (1, 8, 128), 1)
    lane = jax.lax.broadcasted_iota(jnp.int32, (1, 8, 128), 2)
    out_ref[...] = jnp.where((sub == 0) & (lane == 0), tile_sum,
                             jnp.where((sub == 0) & (lane == 1), tile_cnt, 0.0))


def _choose_row_tile(n, c, itemsize):
    """Row tile from a VMEM working-set budget, v7x-core-count aware."""
    c_lanes = _round_up(c, 128)
    per_row = (2 * c_lanes * itemsize      # double-buffered logits block
               + 2 * 128 * 4               # double-buffered (TN,1) int32 targets (lane-padded)
               + 5 * c_lanes * 4)          # generous allowance for f32 temporaries
    rt = max(16, ((_VMEM_WORK_BUDGET // per_row) // 16) * 16)
    rt = min(rt, _MAX_ROW_TILE)
    # Keep >= ~8 grid steps when N allows so both v7x TensorCores get work;
    # no-op on single-TC v5e/v6e.
    rt = min(rt, max(16, _round_up(pl.cdiv(n, 8), 16)))
    return rt


def focal_loss(logits, target, *, gamma=GAMMA, eps=EPS,
               ignore_index=IGNORE_INDEX, reduction="mean", row_tile=None):
    """logits: [N, C] float (raw logits); target: [N] int. Softmax applied."""
    # TODO(synk): reduction='none' (per-row output) and with_logits=False
    # (pre-softmax probabilities with eps clamp) are not implemented in-kernel.
    assert reduction in ("mean", "sum")
    n, c = logits.shape

    # DMA logits in their native dtype; anything but bf16/f32 is upcast once.
    if logits.dtype not in (jnp.bfloat16, jnp.float32):
        logits = logits.astype(jnp.float32)
    itemsize = logits.dtype.itemsize

    if row_tile is None:
        row_tile = _choose_row_tile(n, c, itemsize)
    g = pl.cdiv(n, row_tile)

    tgt = target.astype(jnp.int32).reshape(n, 1)   # tiny (N*4 bytes)

    kernel = functools.partial(_focal_loss_kernel, gamma=float(gamma),
                               ignore_index=int(ignore_index),
                               n_rows=int(n), row_tile=int(row_tile))

    cost = pl.CostEstimate(
        flops=int(6 * n * c),
        transcendentals=int(n * c + 3 * n),
        bytes_accessed=int(n * c * itemsize + 4 * n + 4 * g * 8 * 128),
    )

    partials = pl.pallas_call(
        kernel,
        out_shape=jax.ShapeDtypeStruct((g, 8, 128), jnp.float32),
        grid_spec=pltpu.PrefetchScalarGridSpec(
            num_scalar_prefetch=0,
            grid=(g,),
            in_specs=[
                pl.BlockSpec((row_tile, 1), lambda i: (i, 0)),   # targets
                pl.BlockSpec((row_tile, c), lambda i: (i, 0)),   # logits, full C
            ],
            out_specs=pl.BlockSpec((1, 8, 128), lambda i: (i, 0, 0)),
        ),
        compiler_params=pltpu.CompilerParams(
            dimension_semantics=("parallel",),
            vmem_limit_bytes=_VMEM_LIMIT,
        ),
        cost_estimate=cost,
    )(tgt, logits)

    total = jnp.sum(partials[:, 0, 0])
    count = jnp.sum(partials[:, 0, 1])
    if reduction == "sum":
        return total.astype(jnp.float32)
    # mean over non-ignored rows; NaN when every row is ignored (matches
    # torch.mean over an empty tensor).
    return (total / count).astype(jnp.float32)


def focal_loss_mean(logits, target, *, gamma=GAMMA, ignore_index=IGNORE_INDEX,
                    row_tile=None):
    return focal_loss(logits, target, gamma=gamma, ignore_index=ignore_index,
                      reduction="mean", row_tile=row_tile)


def _reference_focal_loss(logits, target, gamma=GAMMA, ignore_index=IGNORE_INDEX):
    logp = jax.nn.log_softmax(logits.astype(jnp.float32), axis=-1)
    safe_t = jnp.clip(target, 0, logits.shape[-1] - 1)
    lp_t = jnp.take_along_axis(logp, safe_t[:, None], axis=-1)[:, 0]
    pt = jnp.exp(lp_t)
    loss = -((1.0 - pt) ** gamma) * lp_t
    mask = (target != ignore_index).astype(jnp.float32)
    return jnp.sum(loss * mask) / jnp.sum(mask)


if __name__ == "__main__":
    key = jax.random.PRNGKey(0)
    k1, k2 = jax.random.split(key)

    # N not a multiple of the row tile -> exercises the ragged-tail mask and a
    # multi-step "parallel" grid; C not a multiple of 128 -> exercises the
    # unaligned lane path.
    N, C = 20, 32
    logits = jax.random.normal(k1, (N, C), dtype=jnp.float32)
    target = jax.random.randint(k2, (N,), 0, C, dtype=jnp.int32)
    target = target.at[3].set(IGNORE_INDEX).at[10].set(IGNORE_INDEX)

    out = jax.block_until_ready(focal_loss_mean(logits, target))
    ref = _reference_focal_loss(logits, target)
    assert jnp.allclose(out, ref, rtol=1e-5, atol=1e-6), (out, ref)

    # bf16 fast path: logits are DMA'd as bf16 and upcast on-chip.
    logits_bf16 = logits.astype(jnp.bfloat16)
    out_bf16 = jax.block_until_ready(focal_loss_mean(logits_bf16, target))
    ref_bf16 = _reference_focal_loss(logits_bf16, target)
    assert jnp.allclose(out_bf16, ref_bf16, rtol=1e-4, atol=1e-5), (out_bf16, ref_bf16)

    # reduction='sum' path
    out_sum = jax.block_until_ready(focal_loss(logits, target, reduction="sum"))
    ref_sum = ref * jnp.sum((target != IGNORE_INDEX).astype(jnp.float32))
    assert jnp.allclose(out_sum, ref_sum, rtol=1e-5, atol=1e-5), (out_sum, ref_sum)

    print("KERNEL_OK")
</pallas_src>

<mosaic_0001>
module attributes {stable_mosaic.version = 11 : i64} {
  func.func @_focal_loss_kernel(%arg0: i32, %arg1: memref<16x1xi32, #tpu.memory_space<vmem>>, %arg2: memref<16x32xf32, #tpu.memory_space<vmem>>, %arg3: memref<1x8x128xf32, #tpu.memory_space<vmem>>) attributes {dimension_semantics = [#tpu.dimension_semantics<parallel>], iteration_bounds = array<i64: 2>, scalar_prefetch = 0 : i64, scratch_operands = 0 : i64, tpu.core_type = #tpu.core_type<tc>, window_params = [{transform_indices = @transform_0, window_bounds = array<i64: 16, 1>}, {transform_indices = @transform_1, window_bounds = array<i64: 16, 32>}, {transform_indices = @transform_2, window_bounds = array<i64: 1, 8, 128>}]} {
    %c0 = arith.constant 0 : index
    %c0_0 = arith.constant 0 : index
    %0 = vector.load %arg2[%c0, %c0_0] : memref<16x32xf32, #tpu.memory_space<vmem>>, vector<16x32xf32>
    %c0_1 = arith.constant 0 : index
    %c0_2 = arith.constant 0 : index
    %1 = vector.load %arg1[%c0_1, %c0_2] : memref<16x1xi32, #tpu.memory_space<vmem>>, vector<16x1xi32>
    %c16_i32 = arith.constant 16 : i32
    %2 = arith.muli %arg0, %c16_i32 : i32
    %3 = tpu.iota {dimensions = array<i32: 0>} : vector<16x1xi32>
    %4 = vector.broadcast %2 : i32 to vector<16x1xi32>
    %5 = arith.addi %4, %3 : vector<16x1xi32>
    %c20_i32 = arith.constant 20 : i32
    %6 = vector.broadcast %c20_i32 : i32 to vector<16x1xi32>
    %7 = arith.cmpi slt, %5, %6 : vector<16x1xi32>
    %c-100_i32 = arith.constant -100 : i32
    %8 = vector.broadcast %c-100_i32 : i32 to vector<16x1xi32>
    %9 = arith.cmpi ne, %1, %8 : vector<16x1xi32>
    %10 = arith.andi %7, %9 : vector<16x1xi1>
    %cst = arith.constant dense<0xFF800000> : vector<16xf32>
    %11 = vector.multi_reduction <maximumf>, %0, %cst [1] : vector<16x32xf32> to vector<16xf32>
    %12 = vector.shape_cast %11 : vector<16xf32> to vector<16x1xf32>
    %13 = vector.broadcast %12 : vector<16x1xf32> to vector<16x32xf32>
    %14 = arith.subf %0, %13 : vector<16x32xf32>
    %15 = math.exp %14 : vector<16x32xf32>
    %cst_3 = arith.constant dense<0.000000e+00> : vector<16xf32>
    %16 = vector.multi_reduction <add>, %15, %cst_3 [1] : vector<16x32xf32> to vector<16xf32>
    %17 = vector.shape_cast %16 : vector<16xf32> to vector<16x1xf32>
    %18 = math.log %17 : vector<16x1xf32>
    %19 = tpu.iota {dimensions = array<i32: 1>} : vector<16x32xi32>
    %20 = vector.broadcast %1 : vector<16x1xi32> to vector<16x32xi32>
    %21 = arith.cmpi eq, %19, %20 : vector<16x32xi32>
    %22 = vector.broadcast %12 : vector<16x1xf32> to vector<16x32xf32>
    %23 = arith.subf %0, %22 : vector<16x32xf32>
    %cst_4 = arith.constant 0.000000e+00 : f32
    %24 = vector.broadcast %cst_4 : f32 to vector<16x32xf32>
    %25 = arith.select %21, %23, %24 : vector<16x32xi1>, vector<16x32xf32>
    %cst_5 = arith.constant dense<0.000000e+00> : vector<16xf32>
    %26 = vector.multi_reduction <add>, %25, %cst_5 [1] : vector<16x32xf32> to vector<16xf32>
    %27 = vector.shape_cast %26 : vector<16xf32> to vector<16x1xf32>
    %28 = arith.subf %27, %18 : vector<16x1xf32>
    %29 = math.exp %28 : vector<16x1xf32>
    %cst_6 = arith.constant 1.000000e+00 : f32
    %30 = vector.broadcast %cst_6 : f32 to vector<16x1xf32>
    %31 = arith.subf %30, %29 : vector<16x1xf32>
    %cst_7 = arith.constant 0.000000e+00 : f32
    %32 = vector.broadcast %cst_7 : f32 to vector<16x1xf32>
    %33 = arith.subf %32, %31 : vector<16x1xf32>
    %34 = arith.mulf %33, %28 : vector<16x1xf32>
    %cst_8 = arith.constant 0.000000e+00 : f32
    %35 = vector.broadcast %cst_8 : f32 to vector<16x1xf32>
    %36 = arith.select %10, %34, %35 : vector<16x1xi1>, vector<16x1xf32>
    %37 = vector.shape_cast %36 : vector<16x1xf32> to vector<1x16x1xf32>
    %cst_9 = arith.constant dense<0.000000e+00> : vector<1xf32>
    %38 = vector.multi_reduction <add>, %37, %cst_9 [1, 2] : vector<1x16x1xf32> to vector<1xf32>
    %39 = vector.shape_cast %38 : vector<1xf32> to vector<1x1x1xf32>
    %40 = vector.extract %39[0, 0, 0] : f32 from vector<1x1x1xf32>
    %41 = arith.extui %10 : vector<16x1xi1> to vector<16x1xi32>
    %42 = arith.sitofp %41 : vector<16x1xi32> to vector<16x1xf32>
    %43 = vector.shape_cast %42 : vector<16x1xf32> to vector<1x16x1xf32>
    %cst_10 = arith.constant dense<0.000000e+00> : vector<1xf32>
    %44 = vector.multi_reduction <add>, %43, %cst_10 [1, 2] : vector<1x16x1xf32> to vector<1xf32>
    %45 = vector.shape_cast %44 : vector<1xf32> to vector<1x1x1xf32>
    %46 = vector.extract %45[0, 0, 0] : f32 from vector<1x1x1xf32>
    %47 = tpu.iota {dimensions = array<i32: 1>} : vector<1x8x128xi32>
    %48 = tpu.iota {dimensions = array<i32: 2>} : vector<1x8x128xi32>
    %c0_i32 = arith.constant 0 : i32
    %49 = vector.broadcast %c0_i32 : i32 to vector<1x8x128xi32>
    %50 = arith.cmpi eq, %47, %49 : vector<1x8x128xi32>
    %c0_i32_11 = arith.constant 0 : i32
    %51 = vector.broadcast %c0_i32_11 : i32 to vector<1x8x128xi32>
    %52 = arith.cmpi eq, %48, %51 : vector<1x8x128xi32>
    %53 = arith.andi %50, %52 : vector<1x8x128xi1>
    %c0_i32_12 = arith.constant 0 : i32
    %54 = vector.broadcast %c0_i32_12 : i32 to vector<1x8x128xi32>
    %55 = arith.cmpi eq, %47, %54 : vector<1x8x128xi32>
    %c1_i32 = arith.constant 1 : i32
    %56 = vector.broadcast %c1_i32 : i32 to vector<1x8x128xi32>
    %57 = arith.cmpi eq, %48, %56 : vector<1x8x128xi32>
    %58 = arith.andi %55, %57 : vector<1x8x128xi1>
    %cst_13 = arith.constant 0.000000e+00 : f32
    %59 = vector.broadcast %46 : f32 to vector<1x8x128xf32>
    %60 = vector.broadcast %cst_13 : f32 to vector<1x8x128xf32>
    %61 = arith.select %58, %59, %60 : vector<1x8x128xi1>, vector<1x8x128xf32>
    %62 = vector.broadcast %40 : f32 to vector<1x8x128xf32>
    %63 = arith.select %53, %62, %61 : vector<1x8x128xi1>, vector<1x8x128xf32>
    %c0_14 = arith.constant 0 : index
    %c0_15 = arith.constant 0 : index
    %c0_16 = arith.constant 0 : index
    %64 = vector.load %arg3[%c0_14, %c0_15, %c0_16] : memref<1x8x128xf32, #tpu.memory_space<vmem>>, vector<1x8x128xf32>
    tpu.vector_store %arg3[%c0_14, %c0_15, %c0_16], %63 {strides = array<i32>} : memref<1x8x128xf32, #tpu.memory_space<vmem>>, vector<1x8x128xf32>,
    return
  }
  func.func @transform_0(%arg0: i32) -> (i32, i32) {
    %c0_i32 = arith.constant 0 : i32
    %c0_i32_0 = arith.constant 0 : i32
    return %arg0, %c0_i32 : i32, i32
  }
  func.func @transform_1(%arg0: i32) -> (i32, i32) {
    %c0_i32 = arith.constant 0 : i32
    %c0_i32_0 = arith.constant 0 : i32
    return %arg0, %c0_i32 : i32, i32
  }
  func.func @transform_2(%arg0: i32) -> (i32, i32, i32) {
    %c0_i32 = arith.constant 0 : i32
    %c0_i32_0 = arith.constant 0 : i32
    %c0_i32_1 = arith.constant 0 : i32
    return %arg0, %c0_i32, %c0_i32_0 : i32, i32, i32
  }
}

</mosaic_0001>

<llo_original>
// kernel: tpu_custom_call.1
$region0: #{tpu_custom_call.1}
  #allocation0 [shape = 'u32[]', space=smem, size = 0x4, offset = 0x4, fixed_abs, tag = 'smem constant byte address 0x4 - core index']
  #allocation1 [shape = 'u32[72,128]{1,0:T(1,128)}', space=vmem, size = 0x9000, scoped, tag = 'internal scratch']
  %s0 = inlined_call_operand.vmem [shape: s32[20,1], index: 0, kind: input, shape index: {}]
  %s1 = inlined_call_operand.vmem [shape: f32[20,32], index: 1, kind: input, shape index: {}]
  %s2 = inlined_call_operand.hbm [shape: f32[2,8,128], index: 2, kind: output, shape index: {}]
  %s3 = sld [smem:[#allocation0]]
  $region41: #{tpu_custom_call.1} parent=0
    _
  %s5 = ssub.s32 1, %s3
  %s6 = scalar_select 0, %s5, %s3
  $region1: #{tpu_custom_call.1} parent=0
    #allocation2 [shape = 'u8[8192]{0}', space=vmem, size = 0x2000, scoped, tag = 'output window, operand 0']
    #allocation3 [shape = 's32[2]{0}', space=sflag, size = 0x8, scoped, tag = 'scoped memory for tpu_custom_call.1']
    %7 = vsyncpa [#allocation3], 0
    %s8 = scalar_lea.sflag [#allocation3], 1
    %9 = vsyncpa %s8, 0
    loop: start=0, step=1, limit=4
    $region2: #{tpu_custom_call.1} parent=1 // loop_pre_header
      _
    $region3: #{tpu_custom_call.1} parent=1 // loop_header
      %s11 = sphi 0, %s15
      %p12 = scmp.ge.s32.totalorder %s11, 4
      %s21 = sphi 0, %s23
      %s24 = sphi 0, %s21
      %s25 = sphi 0, %s24
      %s41 = sphi 0, %s25
      %s47 = sphi 0, %s49
      %s50 = sphi 0, %s47
      %s51 = sphi 0, %s50
      %s67 = sphi 0, %s51
      %s73 = sphi 0, %s75
      %s76 = sphi 0, %s73
      %s77 = sphi 0, %s76
      %s93 = sphi 0, %s77
    $region4: #{tpu_custom_call.1} parent=1 // loop_header_branch
      %14 = sbr.rel (%p12) target = $region8
    $region5: #{tpu_custom_call.1} parent=1 // loop_body
      %s16 = ssub.s32 %s11, 1
      %s17 = ssub.s32 %s11, 2
      %s18 = sadd.s32 %s11, 1
      %s19 = ssub.s32 %s11, %s18
      %p20 = scmp.eq.s32.totalorder %s19, 0
      %s22 = sadd.s32 %s21, 1
      %s23 = scalar_select %p20, %s21, %s22
      %p26 = pneg %p20
      %p27 = scmp.eq.s32.totalorder %s11, 1
      %p28 = por %p26, %p27
      %p29 = scmp.ne.s32.totalorder %s21, %s24
      %p30 = scmp.eq.s32.totalorder %s11, 0
      %p31 = por %p29, %p30
      %p32 = scmp.ne.s32.totalorder %s21, %s24
      %p33 = scmp.eq.s32.totalorder %s16, 1
      %p34 = por %p32, %p33
      %p35 = scmp.ne.s32.totalorder %s24, %s25
      %p36 = scmp.eq.s32.totalorder %s16, 0
      %p37 = por %p35, %p36
      %p38 = scmp.ne.s32.totalorder %s24, %s25
      %p39 = scmp.eq.s32.totalorder %s17, 1
      %p40 = por %p38, %p39
      %p42 = scmp.ne.s32.totalorder %s25, %s41
      %p43 = scmp.eq.s32.totalorder %s17, 0
      %p44 = por %p42, %p43
      %s45 = ssub.s32 %s11, %s18
      %p46 = scmp.eq.s32.totalorder %s45, 0
      %s48 = sadd.s32 %s47, 1
      %s49 = scalar_select %p46, %s47, %s48
      %p52 = pneg %p46
      %p53 = scmp.eq.s32.totalorder %s11, 1
      %p54 = por %p52, %p53
      %p55 = scmp.ne.s32.totalorder %s47, %s50
      %p56 = scmp.eq.s32.totalorder %s11, 0
      %p57 = por %p55, %p56
      %p58 = scmp.ne.s32.totalorder %s47, %s50
      %p59 = scmp.eq.s32.totalorder %s16, 1
      %p60 = por %p58, %p59
      %p61 = scmp.ne.s32.totalorder %s50, %s51
      %p62 = scmp.eq.s32.totalorder %s16, 0
      %p63 = por %p61, %p62
      %p64 = scmp.ne.s32.totalorder %s50, %s51
      %p65 = scmp.eq.s32.totalorder %s17, 1
      %p66 = por %p64, %p65
      %p68 = scmp.ne.s32.totalorder %s51, %s67
      %p69 = scmp.eq.s32.totalorder %s17, 0
      %p70 = por %p68, %p69
      %s71 = ssub.s32 %s11, %s18
      %p72 = scmp.eq.s32.totalorder %s71, 0
      %s74 = sadd.s32 %s73, 1
      %s75 = scalar_select %p72, %s73, %s74
      %p78 = pneg %p72
      %p79 = scmp.eq.s32.totalorder %s11, 1
      %p80 = por %p78, %p79
      %p81 = scmp.ne.s32.totalorder %s73, %s76
      %p82 = scmp.eq.s32.totalorder %s11, 0
      %p83 = por %p81, %p82
      %p84 = scmp.ne.s32.totalorder %s73, %s76
      %p85 = scmp.eq.s32.totalorder %s16, 1
      %p86 = por %p84, %p85
      %p87 = scmp.ne.s32.totalorder %s76, %s77
      %p88 = scmp.eq.s32.totalorder %s16, 0
      %p89 = por %p87, %p88
      %p90 = scmp.ne.s32.totalorder %s76, %s77
      %p91 = scmp.eq.s32.totalorder %s17, 1
      %p92 = por %p90, %p91
      %p94 = scmp.ne.s32.totalorder %s77, %s93
      %p95 = scmp.eq.s32.totalorder %s17, 0
      %p96 = por %p94, %p95
      %p97 = scmp.le.s32.totalorder 1, %s11
      %p98 = scmp.lt.s32.totalorder %s11, 3
      %p99 = pnand %p97, %p98
      %p100 = pneg %p99
      // Predicated region
      $region9: #{tpu_custom_call.1} parent=5 // pred_check
        _
      $region10: #{tpu_custom_call.1} parent=5 // pred_check_branch
        %102 = sbr.rel (%p99) target = $region12
      $region11: #{tpu_custom_call.1} parent=5 // pred_region
        %s103 = ssub.s32 %s11, 1
      $region12: #{tpu_custom_call.1} parent=5 // pred_fallthru
        _
      %p104 = scmp.lt.s32.totalorder %s11, 2
      // Predicated region
      $region13: #{tpu_custom_call.1} parent=5 // pred_check
        %p105 = pneg %p104
      $region14: #{tpu_custom_call.1} parent=5 // pred_check_branch
        %107 = sbr.rel (%p105) target = $region16
      $region15: #{tpu_custom_call.1} parent=5 // pred_region
        // Predicated region
        $region17: #{tpu_custom_call.1} parent=15 // pred_check
          %p108 = pneg %p31
        $region18: #{tpu_custom_call.1} parent=15 // pred_check_branch
          %110 = sbr.rel (%p108) target = $region20
        $region19: #{tpu_custom_call.1} parent=15 // pred_region
          %s111 = smul.u32 2, %s11
          %s112 = ssub.s32 3, %s111
          %p113 = scmp.lt.s32.totalorder %s112, 2
          %s114 = scalar_select %p113, %s112, 2
          %s115 = smul.u32 8, %s114
          %p116 = scmp.lt.s32.totalorder %s111, 2
          %s117 = scalar_select %p116, %s111, 2
          %s118 = smul.addr %s117, 8
          %s119 = scalar_lea.vmem %s0, %s118
          %s120 = smul.u32 2, %s11
          %s121 = ssub.s32 3, %s120
          %p122 = scmp.lt.s32.totalorder %s121, 2
          %s123 = scalar_select %p122, %s121, 2
          %s124 = smul.u32 8, %s123
        $region20: #{tpu_custom_call.1} parent=15 // pred_fallthru
          _
        // Predicated region
        $region21: #{tpu_custom_call.1} parent=15 // pred_check
          %p125 = pneg %p57
        $region22: #{tpu_custom_call.1} parent=15 // pred_check_branch
          %127 = sbr.rel (%p125) target = $region24
        $region23: #{tpu_custom_call.1} parent=15 // pred_region
          %s128 = smul.u32 2, %s11
          %s129 = ssub.s32 3, %s128
          %p130 = scmp.lt.s32.totalorder %s129, 2
          %s131 = scalar_select %p130, %s129, 2
          %s132 = smul.u32 8, %s131
          %p133 = scmp.lt.s32.totalorder %s128, 2
          %s134 = scalar_select %p133, %s128, 2
          %s135 = smul.addr %s134, 8
          %s136 = scalar_lea.vmem %s1, %s135
          %s137 = smul.u32 2, %s11
          %s138 = ssub.s32 3, %s137
          %p139 = scmp.lt.s32.totalorder %s138, 2
          %s140 = scalar_select %p139, %s138, 2
          %s141 = smul.u32 8, %s140
        $region24: #{tpu_custom_call.1} parent=15 // pred_fallthru
          _
      $region16: #{tpu_custom_call.1} parent=5 // pred_fallthru
        _
      %p142 = scmp.le.s32.totalorder 1, %s11
      %p143 = scmp.lt.s32.totalorder %s11, 3
      %p144 = pnand %p142, %p143
      %p145 = pneg %p144
      // Predicated region
      $region25: #{tpu_custom_call.1} parent=5 // pred_check
        _
      $region26: #{tpu_custom_call.1} parent=5 // pred_check_branch
        %147 = sbr.rel (%p144) target = $region28
      $region27: #{tpu_custom_call.1} parent=5 // pred_region
        %s148 = ssub.s32 %s11, 1
        %s149 = smul.u32 2, %s16
        %s150 = ssub.s32 3, %s149
        %p151 = scmp.lt.s32.totalorder %s150, 2
        %s152 = scalar_select %p151, %s150, 2
        %s153 = smul.u32 8, %s152
        %p154 = scmp.lt.s32.totalorder %s149, 2
        %s155 = scalar_select %p154, %s149, 2
        %s156 = smul.addr %s155, 8
        %s157 = scalar_lea.vmem %s0, %s156
        %p158 = pneg %p37
        %p159 = pneg %p34
        %s160 = smul.u32 2, %s16
        %s161 = ssub.s32 3, %s160
        %p162 = scmp.lt.s32.totalorder %s161, 2
        %s163 = scalar_select %p162, %s161, 2
        %s164 = smul.u32 8, %s163
        %p165 = scmp.lt.s32.totalorder %s160, 2
        %s166 = scalar_select %p165, %s160, 2
        %s167 = smul.addr %s166, 8
        %s168 = scalar_lea.vmem %s1, %s167
        %p169 = pneg %p63
        %p170 = pneg %p60
        %p171 = pneg %p89
        %p172 = pneg %p86
        %s173 = sand.u32 %s76, 1
        %s174 = scalar_lea.sflag [#allocation3], %s173
        %s175 = sand.u32 %s76, 1
        %s176 = smul.addr %s175, 8
        %s177 = scalar_lea.vmem [#allocation2], %s176
        %s178 = smul.u32 2, %s16
        %s179 = ssub.s32 3, %s178
        %p180 = scmp.lt.s32.totalorder %s179, 2
        %s181 = scalar_select %p180, %s179, 2
        %s182 = smul.u32 8, %s181
        %p183 = scmp.lt.s32.totalorder %s178, 2
        %s184 = scalar_select %p183, %s178, 2
        %s185 = smul.addr %s184, 8
        %s186 = scalar_lea.vmem %s0, %s185
        %s187 = smul.u32 2, %s16
        %s188 = ssub.s32 3, %s187
        %p189 = scmp.lt.s32.totalorder %s188, 2
        %s190 = scalar_select %p189, %s188, 2
        %s191 = smul.u32 8, %s190
        %s192 = smul.u32 2, %s16
        %s193 = ssub.s32 3, %s192
        %p194 = scmp.lt.s32.totalorder %s193, 2
        %s195 = scalar_select %p194, %s193, 2
        %s196 = smul.u32 8, %s195
        %p197 = scmp.lt.s32.totalorder %s192, 2
        %s198 = scalar_select %p197, %s192, 2
        %s199 = smul.addr %s198, 8
        %s200 = scalar_lea.vmem %s1, %s199
        %s201 = smul.u32 2, %s16
        %s202 = ssub.s32 3, %s201
        %p203 = scmp.lt.s32.totalorder %s202, 2
        %s204 = scalar_select %p203, %s202, 2
        %s205 = smul.u32 8, %s204
        %v206 = vld [vmem:[%s200] sm:$0xff]
        %v207 = vld [vmem:[%s200 + $0x8] sm:$0xff]
        %v208 = vld [vmem:[%s186] sm:$0xff]
        %v209 = vld [vmem:[%s186 + $0x8] sm:$0xff]
        %s210 = smul.u32 %s16, 16
        %v211 = vlaneseq
        %v212 = vshrl.u32 %v211, 7
        %v213 = vadd.s32 %v212, 8
        %v214 = vstv %s210
        %v215 = vadd.s32 %v214, %v212
        %v216 = vadd.s32 %v214, %v213
        %vm217 = vcmp.lt.s32.totalorder %v215, 20
        %vm218 = vcmp.lt.s32.totalorder %v216, 20
        %vm219 = vcmp.ne.s32.totalorder %v208, 4294967196
        %vm220 = vcmp.ne.s32.totalorder %v209, 4294967196
        %vm221 = vmand %vm217, %vm219
        %vm222 = vmand %vm218, %vm220
        %vm223 = vcmask 261120
        %v224 = vsel %vm223, %v206, -inf
        %225 = vmax.xlane.f32.xlu0 %v224
        %v226 = vpop.xlane.xlu0 %225
        %v227 = vsel %vm223, %v207, -inf
        %228 = vmax.xlane.f32.xlu0 %v227
        %v229 = vpop.xlane.xlu0 %228
        %v230 = vsub.f32 %v206, %v226
        %v231 = vsub.f32 %v207, %v229
        %v232 = vmul.f32 %v230, 1.442695
        %v233 = vpow.pop %v232
        %v234 = vmul.f32 %v231, 1.442695
        %v235 = vpow.pop %v234
        %v236 = vsel %vm223, %v233, 0.0
        %237 = vadd.xlane.f32.xlu0 %v236
        %v238 = vpop.xlane.xlu0 %237
        %v239 = vsel %vm223, %v235, 0.0
        %240 = vadd.xlane.f32.xlu0 %v239
        %v241 = vpop.xlane.xlu0 %240
        %v242 = vlog2.pop %v238
        %v243 = vmul.f32 %v242, 0.6931472
        %v244 = vlog2.pop %v241
        %v245 = vmul.f32 %v244, 0.6931472
        %v246 = vlaneseq
        %v247 = vand.u32 %v246, 127
        %248 = vset.pattern.permute.xlu0 0
        %249 = vperm.xlu0 %248, %v208
        %v250 = vpop.permute.xlu0 %249
        %251 = vset.pattern.permute.xlu0 0
        %252 = vperm.xlu0 %251, %v209
        %v253 = vpop.permute.xlu0 %252
        %vm254 = vcmp.eq.s32.totalorder %v247, %v250
        %vm255 = vcmp.eq.s32.totalorder %v247, %v253
        %v256 = vsel %vm254, %v230, 0.0
        %v257 = vsel %vm255, %v231, 0.0
        %v258 = vsel %vm223, %v256, 0.0
        %259 = vadd.xlane.f32.xlu0 %v258
        %v260 = vpop.xlane.xlu0 %259
        %v261 = vsel %vm223, %v257, 0.0
        %262 = vadd.xlane.f32.xlu0 %v261
        %v263 = vpop.xlane.xlu0 %262
        %v264 = vsub.f32 %v260, %v243
        %v265 = vsub.f32 %v263, %v245
        %v266 = vmul.f32 %v264, 1.442695
        %v267 = vpow.pop %v266
        %v268 = vmul.f32 %v265, 1.442695
        %v269 = vpow.pop %v268
        %v270 = vsub.f32 1.0, %v267
        %v271 = vsub.f32 1.0, %v269
        %v272 = vsub.f32 0.0, %v270
        %v273 = vsub.f32 0.0, %v271
        %v274 = vmul.f32 %v272, %v264
        %v275 = vmul.f32 %v273, %v265
        %v276 = vsel %vm221, %v274, 0.0
        %v277 = vsel %vm222, %v275, 0.0
        %vm278 = vcmask 7168
        %v279 = vsel %vm278, %v276, 0.0
        %v280 = vsel %vm278, %v277, 0.0
        %v281 = vadd.f32 %v279, %v280
        %282 = vadd.xlane.f32.xlu0 %v281
        %v283 = vpop.xlane.xlu0 %282
        %v284 = vrot.slane %v283, 4
        %v285 = vadd.f32 %v283, %v284
        %v286 = vrot.slane %v285, 2
        %v287 = vadd.f32 %v285, %v286
        %v288 = vrot.slane %v287, 1
        %v289 = vadd.f32 %v287, %v288
        %s290 = vtos %v289
        %v291 = vsel %vm221, 1, 0
        %v292 = vsel %vm222, 1, 0
        %v293 = vcvt.s32.f32 %v291
        %v294 = vcvt.s32.f32 %v292
        %v295 = vsel %vm278, %v293, 0.0
        %v296 = vsel %vm278, %v294, 0.0
        %v297 = vadd.f32 %v295, %v296
        %298 = vadd.xlane.f32.xlu0 %v297
        %v299 = vpop.xlane.xlu0 %298
        %v300 = vrot.slane %v299, 4
        %v301 = vadd.f32 %v299, %v300
        %v302 = vrot.slane %v301, 2
        %v303 = vadd.f32 %v301, %v302
        %v304 = vrot.slane %v303, 1
        %v305 = vadd.f32 %v303, %v304
        %s306 = vtos %v305
        %vm307 = vcmp.eq.s32.totalorder %v212, 0
        %vm308 = vcmp.eq.s32.totalorder %v247, 0
        %vm309 = vmand %vm307, %vm308
        %vm310 = vcmp.eq.s32.totalorder %v247, 1
        %vm311 = vmand %vm307, %vm310
        %v312 = vstv %s306
        %v313 = vsel %vm311, %v312, 0.0
        %v314 = vstv %s290
        %v315 = vsel %vm309, %v314, %v313
        %316 = vst [vmem:[%s177] sm:$0xff] %v315
        %s317 = sand.u32 %s76, 1
        %s318 = scalar_lea.sflag [#allocation3], %s317
        %s319 = sand.u32 %s76, 1
        %s320 = smul.addr %s319, 8
        %s321 = scalar_lea.vmem [#allocation2], %s320
        // Predicated region
        $region29: #{tpu_custom_call.1} parent=27 // pred_check
          %p322 = pneg %p86
        $region30: #{tpu_custom_call.1} parent=27 // pred_check_branch
          %324 = sbr.rel (%p322) target = $region32
        $region31: #{tpu_custom_call.1} parent=27 // pred_region
          %326 = vsyncadd %s318, 0
          %s327 = smul.addr %s16, 8
          %s328 = scalar_lea.hbm %s2, %s327
          %s330 = sshll.u32 %s321, 4
          %s331 = int_to_ptr.vmem [resolvable:$true] %s330
          %s332 = sshll.u32 %s328, 4
          %s333 = int_to_ptr.hbm [resolvable:$true] %s332
          %335 = dma.vmem_to_hbm [thread:$0]  %s331, 128, %s333, %s318
        $region32: #{tpu_custom_call.1} parent=27 // pred_fallthru
          _
      $region28: #{tpu_custom_call.1} parent=5 // pred_fallthru
        _
      %p336 = scmp.le.s32.totalorder 2, %s11
      // Predicated region
      $region33: #{tpu_custom_call.1} parent=5 // pred_check
        %p337 = pneg %p336
      $region34: #{tpu_custom_call.1} parent=5 // pred_check_branch
        %339 = sbr.rel (%p337) target = $region36
      $region35: #{tpu_custom_call.1} parent=5 // pred_region
        %s340 = ssub.s32 %s11, 2
        // Predicated region
        $region37: #{tpu_custom_call.1} parent=35 // pred_check
          %p341 = pneg %p92
        $region38: #{tpu_custom_call.1} parent=35 // pred_check_branch
          %343 = sbr.rel (%p341) target = $region40
        $region39: #{tpu_custom_call.1} parent=35 // pred_region
          %s344 = sand.u32 %s77, 1
          %s345 = scalar_lea.sflag [#allocation3], %s344
          %s346 = sand.u32 %s77, 1
          %s347 = smul.addr %s346, 8
          %s348 = scalar_lea.vmem [#allocation2], %s347
          %350 = dma.done %s345, 128
        $region40: #{tpu_custom_call.1} parent=35 // pred_fallthru
          _
      $region36: #{tpu_custom_call.1} parent=5 // pred_fallthru
        _
    $region6: #{tpu_custom_call.1} parent=1 // loop_footer
      %s15 = sadd.s32 1, %s11
    $region7: #{tpu_custom_call.1} parent=1 // loop_footer_branch
      %10 = sbr.rel target = $region3
    $region8: #{tpu_custom_call.1} parent=1 // loop_exit
      _
    %351 = vsyncpa [#allocation3], 1
    %s352 = scalar_lea.sflag [#allocation3], 1
    %353 = vsyncpa %s352, 1

</llo_original>
